<compile_context>
chip_gen: v5e
topology: v5e:2x2
jax: 0.10.0
libtpu: 0.0.40
codegen_flags: <defaults>
</compile_context>

<pallas_src>
import jax
import jax.numpy as jnp
from jax import lax
from jax.experimental import pallas as pl
from jax.experimental.pallas import tpu as pltpu


def _cdiv(a, b):
    return -(-a // b)


def _choose_graphs_per_step(B, N, target_rows=256):
    """Pick graphs-per-step so G*N ~= 256 MXU rows, but keep >=2 grid steps."""
    g = max(1, target_rows // N)
    if B >= 2:
        g = min(g, _cdiv(B, 2))   # >=2 steps => both v7x TensorCores busy
    return max(1, min(g, B))


def gmodel_kernel(x_ref, pe_ref, adj_ref,
                  w_pe_ref, w_emb_ref, b_emb_ref,
                  w_conv_ref, w_comb_ref, b_comb_ref,
                  nemb_ref, pe_out_ref):
    f32 = jnp.float32
    G, N, P = pe_ref.shape
    F = x_ref.shape[-1]
    H = w_emb_ref.shape[-1]
    C = w_comb_ref.shape[-1]

    # ---- pe_agg: pe_new = tanh(pe @ W_pe), all G*N rows in one matmul --------
    pe_flat = pe_ref[...].reshape(G * N, P)
    pe_new_flat = jnp.tanh(jnp.dot(pe_flat, w_pe_ref[...],
                                   preferred_element_type=f32))          # [G*N, P]
    pe_out_ref[...] = pe_new_flat.reshape(G, N, P)
    pe_new = pe_new_flat.reshape(G, N, P)

    # Per-graph Gram gate: S[g,i,j] = sigmoid(<pe_new[g,i], pe_new[g,j]>)
    s_gate = jax.nn.sigmoid(
        jnp.einsum('gip,gjp->gij', pe_new, pe_new,
                   preferred_element_type=f32))                          # [G, N, N]

    # Gated, edge-weighted adjacency (w_adj precomputed on host).
    a_adj = adj_ref[...] * s_gate                                        # [G, N, N]

    # ---- emb: node embedding over G*N rows -----------------------------------
    h_flat = jnp.dot(x_ref[...].reshape(G * N, F), w_emb_ref[...],
                     preferred_element_type=f32) + b_emb_ref[...]        # [G*N, H]
    h = h_flat.reshape(G, N, H)

    # ---- conv: alpha-gated, edge-weighted message passing + projection -------
    m = jnp.einsum('gij,gjh->gih', a_adj, h,
                   preferred_element_type=f32)                           # [G, N, H]
    z = jnp.maximum(jnp.dot(m.reshape(G * N, H), w_conv_ref[...],
                            preferred_element_type=f32), 0.0)            # [G*N, H]

    # ---- comb: output projection ----------------------------------------------
    nemb_flat = jnp.dot(z, w_comb_ref[...],
                        preferred_element_type=f32) + b_comb_ref[...]    # [G*N, C]
    nemb_ref[...] = nemb_flat.reshape(G, N, C)


def gmodel_forward_batched(x, pe, edge_index, edge_weight, params,
                           graphs_per_step=None):
    """Batched forward for B graphs in ONE pallas_call.

    x:           [B, N, F] float32
    pe:          [B, N, P] float32
    edge_index:  [B, 2, E] int32   (row 0 = src, row 1 = dst)
    edge_weight: [B, E]    float32
    Returns (nemb [B, N, C], pe_new [B, N, P]).
    """
    B, N, F = x.shape
    P = pe.shape[-1]
    H = params["w_emb"].shape[1]
    C = params["w_comb"].shape[1]

    G = graphs_per_step or _choose_graphs_per_step(B, N)
    steps = _cdiv(B, G)
    Bp = steps * G

    # ---- host-side glue: dense weighted adjacency (exact scatter-add) ---------
    src = edge_index[:, 0, :].astype(jnp.int32)                          # [B, E]
    dst = edge_index[:, 1, :].astype(jnp.int32)                          # [B, E]
    b_idx = jnp.arange(B, dtype=jnp.int32)[:, None]
    w_adj = jnp.zeros((B, N, N), jnp.float32).at[b_idx, dst, src].add(
        edge_weight.astype(jnp.float32))                                 # [B, N, N]

    # Pad the batch to a multiple of G (zero graphs -> zero outputs, sliced off).
    if Bp != B:
        padb = ((0, Bp - B), (0, 0), (0, 0))
        x, pe, w_adj = jnp.pad(x, padb), jnp.pad(pe, padb), jnp.pad(w_adj, padb)

    def gblock(shape):   # per-step graph block
        nd = len(shape)
        return pl.BlockSpec((G,) + shape, lambda b, _nd=nd: (b,) + (0,) * _nd)

    def pblock(shape):   # shared parameter block (same at every step)
        nd = len(shape)
        return pl.BlockSpec(shape, lambda b, _nd=nd: (0,) * _nd)

    flops = 2 * Bp * N * (P * P + N * P + N * H + F * H + H * H + H * C)
    bytes_accessed = 4 * (Bp * N * (F + 2 * P + N + C)
                          + P * P + F * H + H + H * H + H * C + C)
    cost = pl.CostEstimate(flops=flops,
                           transcendentals=Bp * N * (P + N),
                           bytes_accessed=bytes_accessed)

    nemb, pe_new = pl.pallas_call(
        gmodel_kernel,
        out_shape=(jax.ShapeDtypeStruct((Bp, N, C), jnp.float32),
                   jax.ShapeDtypeStruct((Bp, N, P), jnp.float32)),
        grid=(steps,),
        in_specs=[gblock((N, F)), gblock((N, P)), gblock((N, N)),
                  pblock((P, P)), pblock((F, H)), pblock((1, H)),
                  pblock((H, H)), pblock((H, C)), pblock((1, C))],
        out_specs=(gblock((N, C)), gblock((N, P))),
        compiler_params=pltpu.CompilerParams(
            dimension_semantics=("parallel",)),   # shard steps across v7x TCs
        cost_estimate=cost,
    )(x, pe, w_adj,
      params["w_pe"], params["w_emb"], params["b_emb"],
      params["w_conv"], params["w_comb"], params["b_comb"])

    if Bp != B:
        nemb, pe_new = nemb[:B], pe_new[:B]
    return nemb, pe_new


def gmodel_reference(x, pe, edge_index, edge_weight, params):
    """Single-graph pure-JAX reference (segment scatter-add)."""
    src, dst = edge_index[0], edge_index[1]
    pe_new = jnp.tanh(pe @ params["w_pe"])
    alphas = jax.nn.sigmoid(jnp.sum(pe_new[src] * pe_new[dst], axis=-1))
    h = x @ params["w_emb"] + params["b_emb"]
    msgs = (edge_weight * alphas)[:, None] * h[src]
    m = jnp.zeros_like(h).at[dst].add(msgs)
    z = jnp.maximum(m @ params["w_conv"], 0.0)
    nemb = z @ params["w_comb"] + params["b_comb"]
    return nemb, pe_new


if __name__ == "__main__":
    B, N, F, H, C, P, E = 8, 16, 8, 32, 16, 8, 32

    key = jax.random.PRNGKey(0)
    keys = jax.random.split(key, 10)

    x = jax.random.normal(keys[0], (B, N, F), dtype=jnp.float32)
    pe = jax.random.normal(keys[1], (B, N, P), dtype=jnp.float32)
    src = jax.random.randint(keys[2], (B, E), 0, N, dtype=jnp.int32)
    dst = jax.random.randint(keys[3], (B, E), 0, N, dtype=jnp.int32)
    edge_index = jnp.stack([src, dst], axis=1)                      # [B, 2, E]
    edge_weight = jax.random.uniform(keys[4], (B, E), dtype=jnp.float32)

    params = {
        "w_pe":   0.3 * jax.random.normal(keys[5], (P, P), dtype=jnp.float32),
        "w_emb":  0.3 * jax.random.normal(keys[6], (F, H), dtype=jnp.float32),
        "b_emb":  jnp.zeros((1, H), dtype=jnp.float32),
        "w_conv": 0.3 * jax.random.normal(keys[7], (H, H), dtype=jnp.float32),
        "w_comb": 0.3 * jax.random.normal(keys[8], (H, C), dtype=jnp.float32),
        "b_comb": jnp.zeros((1, C), dtype=jnp.float32),
    }

    nemb, pe_out = gmodel_forward_batched(x, pe, edge_index, edge_weight, params)
    jax.block_until_ready((nemb, pe_out))

    for b in range(B):
        nemb_ref, pe_ref = gmodel_reference(x[b], pe[b], edge_index[b],
                                            edge_weight[b], params)
        assert jnp.allclose(nemb[b], nemb_ref, atol=1e-4, rtol=1e-4), f"nemb mismatch b={b}"
        assert jnp.allclose(pe_out[b], pe_ref, atol=1e-5, rtol=1e-5), f"pe mismatch b={b}"

    print("KERNEL_OK")
</pallas_src>

<mosaic_0001>
module attributes {stable_mosaic.version = 11 : i64} {
  func.func @gmodel_kernel(%arg0: i32, %arg1: memref<4x16x8xf32, #tpu.memory_space<vmem>>, %arg2: memref<4x16x8xf32, #tpu.memory_space<vmem>>, %arg3: memref<4x16x16xf32, #tpu.memory_space<vmem>>, %arg4: memref<8x8xf32, #tpu.memory_space<vmem>>, %arg5: memref<8x32xf32, #tpu.memory_space<vmem>>, %arg6: memref<1x32xf32, #tpu.memory_space<vmem>>, %arg7: memref<32x32xf32, #tpu.memory_space<vmem>>, %arg8: memref<32x16xf32, #tpu.memory_space<vmem>>, %arg9: memref<1x16xf32, #tpu.memory_space<vmem>>, %arg10: memref<4x16x16xf32, #tpu.memory_space<vmem>>, %arg11: memref<4x16x8xf32, #tpu.memory_space<vmem>>) attributes {dimension_semantics = [#tpu.dimension_semantics<parallel>], iteration_bounds = array<i64: 2>, scalar_prefetch = 0 : i64, scratch_operands = 0 : i64, tpu.core_type = #tpu.core_type<tc>, window_params = [{transform_indices = @transform_0, window_bounds = array<i64: 4, 16, 8>}, {transform_indices = @transform_1, window_bounds = array<i64: 4, 16, 8>}, {transform_indices = @transform_2, window_bounds = array<i64: 4, 16, 16>}, {pipeline_mode = #tpu.pipeline_mode<synchronous>, transform_indices = @transform_3, window_bounds = array<i64: 8, 8>}, {pipeline_mode = #tpu.pipeline_mode<synchronous>, transform_indices = @transform_4, window_bounds = array<i64: 8, 32>}, {pipeline_mode = #tpu.pipeline_mode<synchronous>, transform_indices = @transform_5, window_bounds = array<i64: 1, 32>}, {pipeline_mode = #tpu.pipeline_mode<synchronous>, transform_indices = @transform_6, window_bounds = array<i64: 32, 32>}, {pipeline_mode = #tpu.pipeline_mode<synchronous>, transform_indices = @transform_7, window_bounds = array<i64: 32, 16>}, {pipeline_mode = #tpu.pipeline_mode<synchronous>, transform_indices = @transform_8, window_bounds = array<i64: 1, 16>}, {transform_indices = @transform_9, window_bounds = array<i64: 4, 16, 16>}, {transform_indices = @transform_10, window_bounds = array<i64: 4, 16, 8>}]} {
    %c0 = arith.constant 0 : index
    %c0_0 = arith.constant 0 : index
    %c0_1 = arith.constant 0 : index
    %0 = vector.load %arg2[%c0, %c0_0, %c0_1] : memref<4x16x8xf32, #tpu.memory_space<vmem>>, vector<4x16x8xf32>
    %1 = vector.shape_cast %0 : vector<4x16x8xf32> to vector<64x8xf32>
    %c0_2 = arith.constant 0 : index
    %c0_3 = arith.constant 0 : index
    %2 = vector.load %arg4[%c0_2, %c0_3] : memref<8x8xf32, #tpu.memory_space<vmem>>, vector<8x8xf32>
    %cst = arith.constant dense<0.000000e+00> : vector<64x8xf32>
    %3 = tpu.matmul %1, %2, %cst {dimension_numbers = #tpu.dot_dimension_numbers<[1], [0], [0], [1], [0, 0, 1, 1], [], []>} : vector<64x8xf32>, vector<8x8xf32>, vector<64x8xf32> -> vector<64x8xf32>
    %4 = math.tanh %3 : vector<64x8xf32>
    %5 = vector.shape_cast %4 : vector<64x8xf32> to vector<4x16x8xf32>
    %c0_4 = arith.constant 0 : index
    %c0_5 = arith.constant 0 : index
    %c0_6 = arith.constant 0 : index
    %6 = vector.load %arg11[%c0_4, %c0_5, %c0_6] : memref<4x16x8xf32, #tpu.memory_space<vmem>>, vector<4x16x8xf32>
    tpu.vector_store %arg11[%c0_4, %c0_5, %c0_6], %5 {strides = array<i32>} : memref<4x16x8xf32, #tpu.memory_space<vmem>>, vector<4x16x8xf32>,
    %7 = vector.shape_cast %4 : vector<64x8xf32> to vector<4x16x8xf32>
    "tpu.trace_start"() <{level = 10 : i32, message = "gip,gjp->gij"}> : () -> ()
    %cst_7 = arith.constant dense<0.000000e+00> : vector<4x16x16xf32>
    %8 = tpu.matmul %7, %7, %cst_7 {dimension_numbers = #tpu.dot_dimension_numbers<[2], [2], [1], [1], [0, 0, 0, 1, 1, 1], [0], [0]>} : vector<4x16x8xf32>, vector<4x16x8xf32>, vector<4x16x16xf32> -> vector<4x16x16xf32>
    "tpu.trace_stop"() : () -> ()
    %9 = arith.negf %8 : vector<4x16x16xf32>
    %10 = math.exp %9 : vector<4x16x16xf32>
    %cst_8 = arith.constant 1.000000e+00 : f32
    %11 = vector.broadcast %cst_8 : f32 to vector<4x16x16xf32>
    %12 = arith.addf %11, %10 : vector<4x16x16xf32>
    %13 = arith.divf %11, %12 : vector<4x16x16xf32>
    %c0_9 = arith.constant 0 : index
    %c0_10 = arith.constant 0 : index
    %c0_11 = arith.constant 0 : index
    %14 = vector.load %arg3[%c0_9, %c0_10, %c0_11] : memref<4x16x16xf32, #tpu.memory_space<vmem>>, vector<4x16x16xf32>
    %15 = arith.mulf %14, %13 : vector<4x16x16xf32>
    %c0_12 = arith.constant 0 : index
    %c0_13 = arith.constant 0 : index
    %c0_14 = arith.constant 0 : index
    %16 = vector.load %arg1[%c0_12, %c0_13, %c0_14] : memref<4x16x8xf32, #tpu.memory_space<vmem>>, vector<4x16x8xf32>
    %17 = vector.shape_cast %16 : vector<4x16x8xf32> to vector<64x8xf32>
    %c0_15 = arith.constant 0 : index
    %c0_16 = arith.constant 0 : index
    %18 = vector.load %arg5[%c0_15, %c0_16] : memref<8x32xf32, #tpu.memory_space<vmem>>, vector<8x32xf32>
    %cst_17 = arith.constant dense<0.000000e+00> : vector<64x32xf32>
    %19 = tpu.matmul %17, %18, %cst_17 {dimension_numbers = #tpu.dot_dimension_numbers<[1], [0], [0], [1], [0, 0, 1, 1], [], []>} : vector<64x8xf32>, vector<8x32xf32>, vector<64x32xf32> -> vector<64x32xf32>
    %c0_18 = arith.constant 0 : index
    %c0_19 = arith.constant 0 : index
    %20 = vector.load %arg6[%c0_18, %c0_19] : memref<1x32xf32, #tpu.memory_space<vmem>>, vector<1x32xf32>
    %21 = vector.broadcast %20 : vector<1x32xf32> to vector<64x32xf32>
    %22 = arith.addf %19, %21 : vector<64x32xf32>
    %23 = vector.shape_cast %22 : vector<64x32xf32> to vector<4x16x32xf32>
    "tpu.trace_start"() <{level = 10 : i32, message = "gij,gjh->gih"}> : () -> ()
    %cst_20 = arith.constant dense<0.000000e+00> : vector<4x16x32xf32>
    %24 = tpu.matmul %15, %23, %cst_20 {dimension_numbers = #tpu.dot_dimension_numbers<[2], [1], [1], [2], [0, 0, 0, 1, 1, 2], [0], [0]>} : vector<4x16x16xf32>, vector<4x16x32xf32>, vector<4x16x32xf32> -> vector<4x16x32xf32>
    "tpu.trace_stop"() : () -> ()
    %25 = vector.shape_cast %24 : vector<4x16x32xf32> to vector<64x32xf32>
    %c0_21 = arith.constant 0 : index
    %c0_22 = arith.constant 0 : index
    %26 = vector.load %arg7[%c0_21, %c0_22] : memref<32x32xf32, #tpu.memory_space<vmem>>, vector<32x32xf32>
    %cst_23 = arith.constant dense<0.000000e+00> : vector<64x32xf32>
    %27 = tpu.matmul %25, %26, %cst_23 {dimension_numbers = #tpu.dot_dimension_numbers<[1], [0], [0], [1], [0, 0, 1, 1], [], []>} : vector<64x32xf32>, vector<32x32xf32>, vector<64x32xf32> -> vector<64x32xf32>
    %cst_24 = arith.constant 0.000000e+00 : f32
    %28 = vector.broadcast %cst_24 : f32 to vector<64x32xf32>
    %29 = arith.maximumf %27, %28 : vector<64x32xf32>
    %c0_25 = arith.constant 0 : index
    %c0_26 = arith.constant 0 : index
    %30 = vector.load %arg8[%c0_25, %c0_26] : memref<32x16xf32, #tpu.memory_space<vmem>>, vector<32x16xf32>
    %cst_27 = arith.constant dense<0.000000e+00> : vector<64x16xf32>
    %31 = tpu.matmul %29, %30, %cst_27 {dimension_numbers = #tpu.dot_dimension_numbers<[1], [0], [0], [1], [0, 0, 1, 1], [], []>} : vector<64x32xf32>, vector<32x16xf32>, vector<64x16xf32> -> vector<64x16xf32>
    %c0_28 = arith.constant 0 : index
    %c0_29 = arith.constant 0 : index
    %32 = vector.load %arg9[%c0_28, %c0_29] : memref<1x16xf32, #tpu.memory_space<vmem>>, vector<1x16xf32>
    %33 = vector.broadcast %32 : vector<1x16xf32> to vector<64x16xf32>
    %34 = arith.addf %31, %33 : vector<64x16xf32>
    %35 = vector.shape_cast %34 : vector<64x16xf32> to vector<4x16x16xf32>
    %c0_30 = arith.constant 0 : index
    %c0_31 = arith.constant 0 : index
    %c0_32 = arith.constant 0 : index
    %36 = vector.load %arg10[%c0_30, %c0_31, %c0_32] : memref<4x16x16xf32, #tpu.memory_space<vmem>>, vector<4x16x16xf32>
    tpu.vector_store %arg10[%c0_30, %c0_31, %c0_32], %35 {strides = array<i32>} : memref<4x16x16xf32, #tpu.memory_space<vmem>>, vector<4x16x16xf32>,
    return
  }
  func.func @transform_0(%arg0: i32) -> (i32, i32, i32) {
    %c0_i32 = arith.constant 0 : i32
    %c0_i32_0 = arith.constant 0 : i32
    %c0_i32_1 = arith.constant 0 : i32
    return %arg0, %c0_i32, %c0_i32_0 : i32, i32, i32
  }
  func.func @transform_1(%arg0: i32) -> (i32, i32, i32) {
    %c0_i32 = arith.constant 0 : i32
    %c0_i32_0 = arith.constant 0 : i32
    %c0_i32_1 = arith.constant 0 : i32
    return %arg0, %c0_i32, %c0_i32_0 : i32, i32, i32
  }
  func.func @transform_2(%arg0: i32) -> (i32, i32, i32) {
    %c0_i32 = arith.constant 0 : i32
    %c0_i32_0 = arith.constant 0 : i32
    %c0_i32_1 = arith.constant 0 : i32
    return %arg0, %c0_i32, %c0_i32_0 : i32, i32, i32
  }
  func.func @transform_3(%arg0: i32) -> (i32, i32) {
    %c0_i32 = arith.constant 0 : i32
    %c0_i32_0 = arith.constant 0 : i32
    %c0_i32_1 = arith.constant 0 : i32
    return %c0_i32, %c0_i32_0 : i32, i32
  }
  func.func @transform_4(%arg0: i32) -> (i32, i32) {
    %c0_i32 = arith.constant 0 : i32
    %c0_i32_0 = arith.constant 0 : i32
    %c0_i32_1 = arith.constant 0 : i32
    return %c0_i32, %c0_i32_0 : i32, i32
  }
  func.func @transform_5(%arg0: i32) -> (i32, i32) {
    %c0_i32 = arith.constant 0 : i32
    %c0_i32_0 = arith.constant 0 : i32
    %c0_i32_1 = arith.constant 0 : i32
    return %c0_i32, %c0_i32_0 : i32, i32
  }
  func.func @transform_6(%arg0: i32) -> (i32, i32) {
    %c0_i32 = arith.constant 0 : i32
    %c0_i32_0 = arith.constant 0 : i32
    %c0_i32_1 = arith.constant 0 : i32
    return %c0_i32, %c0_i32_0 : i32, i32
  }
  func.func @transform_7(%arg0: i32) -> (i32, i32) {
    %c0_i32 = arith.constant 0 : i32
    %c0_i32_0 = arith.constant 0 : i32
    %c0_i32_1 = arith.constant 0 : i32
    return %c0_i32, %c0_i32_0 : i32, i32
  }
  func.func @transform_8(%arg0: i32) -> (i32, i32) {
    %c0_i32 = arith.constant 0 : i32
    %c0_i32_0 = arith.constant 0 : i32
    %c0_i32_1 = arith.constant 0 : i32
    return %c0_i32, %c0_i32_0 : i32, i32
  }
  func.func @transform_9(%arg0: i32) -> (i32, i32, i32) {
    %c0_i32 = arith.constant 0 : i32
    %c0_i32_0 = arith.constant 0 : i32
    %c0_i32_1 = arith.constant 0 : i32
    return %arg0, %c0_i32, %c0_i32_0 : i32, i32, i32
  }
  func.func @transform_10(%arg0: i32) -> (i32, i32, i32) {
    %c0_i32 = arith.constant 0 : i32
    %c0_i32_0 = arith.constant 0 : i32
    %c0_i32_1 = arith.constant 0 : i32
    return %arg0, %c0_i32, %c0_i32_0 : i32, i32, i32
  }
}

</mosaic_0001>

<llo_original>
// kernel: tpu_custom_call.1
$region0: #{tpu_custom_call.1}
  #allocation0 [shape = 'u32[]', space=smem, size = 0x4, offset = 0x4, fixed_abs, tag = 'smem constant byte address 0x4 - core index']
  #allocation1 [shape = 'u32[72,128]{1,0:T(1,128)}', space=vmem, size = 0x9000, scoped, tag = 'internal scratch']
  %s0 = inlined_call_operand.vmem [shape: f32[8,16,8], index: 0, kind: input, shape index: {}]
  %s1 = inlined_call_operand.vmem [shape: f32[8,16,8], index: 1, kind: input, shape index: {}]
  %s2 = inlined_call_operand.vmem [shape: f32[8,16,16], index: 2, kind: input, shape index: {}]
  %s3 = inlined_call_operand.vmem [shape: f32[8,8], index: 3, kind: input, shape index: {}]
  %s4 = inlined_call_operand.vmem [shape: f32[8,32], index: 4, kind: input, shape index: {}]
  %s5 = inlined_call_operand.vmem [shape: f32[1,32], index: 5, kind: input, shape index: {}]
  %s6 = inlined_call_operand.vmem [shape: f32[32,32], index: 6, kind: input, shape index: {}]
  %s7 = inlined_call_operand.vmem [shape: f32[32,16], index: 7, kind: input, shape index: {}]
  %s8 = inlined_call_operand.vmem [shape: f32[1,16], index: 8, kind: input, shape index: {}]
  %s9 = inlined_call_operand.hbm [shape: f32[8,16,16], index: 9, kind: output, shape index: {0}]
  %s10 = inlined_call_operand.vmem [shape: f32[8,16,8], index: 10, kind: output, shape index: {1}]
  %11 = xla_tuple %s9, %s10
  %s12 = sld [smem:[#allocation0]]
  $region77: #{tpu_custom_call.1} parent=0
    _
  %s14 = ssub.s32 1, %s12
  %s15 = scalar_select 0, %s14, %s12
  $region1: #{tpu_custom_call.1} parent=0
    #allocation2 [shape = 'u8[65536]{0}', space=vmem, size = 0x10000, scoped, tag = 'output window, operand 0']
    #allocation3 [shape = 's32[2]{0}', space=sflag, size = 0x8, scoped, tag = 'scoped memory for tpu_custom_call.1']
    %16 = vsyncpa [#allocation3], 0
    %s17 = scalar_lea.sflag [#allocation3], 1
    %18 = vsyncpa %s17, 0
    loop: start=0, step=1, limit=4
    $region2: #{tpu_custom_call.1} parent=1 // loop_pre_header
      _
    $region3: #{tpu_custom_call.1} parent=1 // loop_header
      %s20 = sphi 0, %s24
      %p21 = scmp.ge.s32.totalorder %s20, 4
      %s30 = sphi 0, %s32
      %s33 = sphi 0, %s30
      %s34 = sphi 0, %s33
      %s50 = sphi 0, %s34
      %s56 = sphi 0, %s58
      %s59 = sphi 0, %s56
      %s60 = sphi 0, %s59
      %s76 = sphi 0, %s60
      %s82 = sphi 0, %s84
      %s85 = sphi 0, %s82
      %s86 = sphi 0, %s85
      %s102 = sphi 0, %s86
      %s106 = sphi 0, %s106
      %s108 = sphi 0, %s106
      %s109 = sphi 0, %s108
      %s123 = sphi 0, %s109
      %s127 = sphi 0, %s127
      %s129 = sphi 0, %s127
      %s130 = sphi 0, %s129
      %s144 = sphi 0, %s130
      %s148 = sphi 0, %s148
      %s150 = sphi 0, %s148
      %s151 = sphi 0, %s150
      %s165 = sphi 0, %s151
      %s169 = sphi 0, %s169
      %s171 = sphi 0, %s169
      %s172 = sphi 0, %s171
      %s186 = sphi 0, %s172
      %s190 = sphi 0, %s190
      %s192 = sphi 0, %s190
      %s193 = sphi 0, %s192
      %s207 = sphi 0, %s193
      %s211 = sphi 0, %s211
      %s213 = sphi 0, %s211
      %s214 = sphi 0, %s213
      %s228 = sphi 0, %s214
      %s234 = sphi 0, %s236
      %s237 = sphi 0, %s234
      %s238 = sphi 0, %s237
      %s254 = sphi 0, %s238
      %s260 = sphi 0, %s262
      %s263 = sphi 0, %s260
      %s264 = sphi 0, %s263
      %s280 = sphi 0, %s264
    $region4: #{tpu_custom_call.1} parent=1 // loop_header_branch
      %23 = sbr.rel (%p21) target = $region8
    $region5: #{tpu_custom_call.1} parent=1 // loop_body
      %s25 = ssub.s32 %s20, 1
      %s26 = ssub.s32 %s20, 2
      %s27 = sadd.s32 %s20, 1
      %s28 = ssub.s32 %s20, %s27
      %p29 = scmp.eq.s32.totalorder %s28, 0
      %s31 = sadd.s32 %s30, 1
      %s32 = scalar_select %p29, %s30, %s31
      %p35 = pneg %p29
      %p36 = scmp.eq.s32.totalorder %s20, 1
      %p37 = por %p35, %p36
      %p38 = scmp.ne.s32.totalorder %s30, %s33
      %p39 = scmp.eq.s32.totalorder %s20, 0
      %p40 = por %p38, %p39
      %p41 = scmp.ne.s32.totalorder %s30, %s33
      %p42 = scmp.eq.s32.totalorder %s25, 1
      %p43 = por %p41, %p42
      %p44 = scmp.ne.s32.totalorder %s33, %s34
      %p45 = scmp.eq.s32.totalorder %s25, 0
      %p46 = por %p44, %p45
      %p47 = scmp.ne.s32.totalorder %s33, %s34
      %p48 = scmp.eq.s32.totalorder %s26, 1
      %p49 = por %p47, %p48
      %p51 = scmp.ne.s32.totalorder %s34, %s50
      %p52 = scmp.eq.s32.totalorder %s26, 0
      %p53 = por %p51, %p52
      %s54 = ssub.s32 %s20, %s27
      %p55 = scmp.eq.s32.totalorder %s54, 0
      %s57 = sadd.s32 %s56, 1
      %s58 = scalar_select %p55, %s56, %s57
      %p61 = pneg %p55
      %p62 = scmp.eq.s32.totalorder %s20, 1
      %p63 = por %p61, %p62
      %p64 = scmp.ne.s32.totalorder %s56, %s59
      %p65 = scmp.eq.s32.totalorder %s20, 0
      %p66 = por %p64, %p65
      %p67 = scmp.ne.s32.totalorder %s56, %s59
      %p68 = scmp.eq.s32.totalorder %s25, 1
      %p69 = por %p67, %p68
      %p70 = scmp.ne.s32.totalorder %s59, %s60
      %p71 = scmp.eq.s32.totalorder %s25, 0
      %p72 = por %p70, %p71
      %p73 = scmp.ne.s32.totalorder %s59, %s60
      %p74 = scmp.eq.s32.totalorder %s26, 1
      %p75 = por %p73, %p74
      %p77 = scmp.ne.s32.totalorder %s60, %s76
      %p78 = scmp.eq.s32.totalorder %s26, 0
      %p79 = por %p77, %p78
      %s80 = ssub.s32 %s20, %s27
      %p81 = scmp.eq.s32.totalorder %s80, 0
      %s83 = sadd.s32 %s82, 1
      %s84 = scalar_select %p81, %s82, %s83
      %p87 = pneg %p81
      %p88 = scmp.eq.s32.totalorder %s20, 1
      %p89 = por %p87, %p88
      %p90 = scmp.ne.s32.totalorder %s82, %s85
      %p91 = scmp.eq.s32.totalorder %s20, 0
      %p92 = por %p90, %p91
      %p93 = scmp.ne.s32.totalorder %s82, %s85
      %p94 = scmp.eq.s32.totalorder %s25, 1
      %p95 = por %p93, %p94
      %p96 = scmp.ne.s32.totalorder %s85, %s86
      %p97 = scmp.eq.s32.totalorder %s25, 0
      %p98 = por %p96, %p97
      %p99 = scmp.ne.s32.totalorder %s85, %s86
      %p100 = scmp.eq.s32.totalorder %s26, 1
      %p101 = por %p99, %p100
      %p103 = scmp.ne.s32.totalorder %s86, %s102
      %p104 = scmp.eq.s32.totalorder %s26, 0
      %p105 = por %p103, %p104
      %s107 = sadd.s32 %s106, 1
      %p110 = scmp.eq.s32.totalorder %s20, 1
      %p111 = scmp.ne.s32.totalorder %s106, %s108
      %p112 = scmp.eq.s32.totalorder %s20, 0
      %p113 = por %p111, %p112
      %p114 = scmp.ne.s32.totalorder %s106, %s108
      %p115 = scmp.eq.s32.totalorder %s25, 1
      %p116 = por %p114, %p115
      %p117 = scmp.ne.s32.totalorder %s108, %s109
      %p118 = scmp.eq.s32.totalorder %s25, 0
      %p119 = por %p117, %p118
      %p120 = scmp.ne.s32.totalorder %s108, %s109
      %p121 = scmp.eq.s32.totalorder %s26, 1
      %p122 = por %p120, %p121
      %p124 = scmp.ne.s32.totalorder %s109, %s123
      %p125 = scmp.eq.s32.totalorder %s26, 0
      %p126 = por %p124, %p125
      %s128 = sadd.s32 %s127, 1
      %p131 = scmp.eq.s32.totalorder %s20, 1
      %p132 = scmp.ne.s32.totalorder %s127, %s129
      %p133 = scmp.eq.s32.totalorder %s20, 0
      %p134 = por %p132, %p133
      %p135 = scmp.ne.s32.totalorder %s127, %s129
      %p136 = scmp.eq.s32.totalorder %s25, 1
      %p137 = por %p135, %p136
      %p138 = scmp.ne.s32.totalorder %s129, %s130
      %p139 = scmp.eq.s32.totalorder %s25, 0
      %p140 = por %p138, %p139
      %p141 = scmp.ne.s32.totalorder %s129, %s130
      %p142 = scmp.eq.s32.totalorder %s26, 1
      %p143 = por %p141, %p142
      %p145 = scmp.ne.s32.totalorder %s130, %s144
      %p146 = scmp.eq.s32.totalorder %s26, 0
      %p147 = por %p145, %p146
      %s149 = sadd.s32 %s148, 1
      %p152 = scmp.eq.s32.totalorder %s20, 1
      %p153 = scmp.ne.s32.totalorder %s148, %s150
      %p154 = scmp.eq.s32.totalorder %s20, 0
      %p155 = por %p153, %p154
      %p156 = scmp.ne.s32.totalorder %s148, %s150
      %p157 = scmp.eq.s32.totalorder %s25, 1
      %p158 = por %p156, %p157
      %p159 = scmp.ne.s32.totalorder %s150, %s151
      %p160 = scmp.eq.s32.totalorder %s25, 0
      %p161 = por %p159, %p160
      %p162 = scmp.ne.s32.totalorder %s150, %s151
      %p163 = scmp.eq.s32.totalorder %s26, 1
      %p164 = por %p162, %p163
      %p166 = scmp.ne.s32.totalorder %s151, %s165
      %p167 = scmp.eq.s32.totalorder %s26, 0
      %p168 = por %p166, %p167
      %s170 = sadd.s32 %s169, 1
      %p173 = scmp.eq.s32.totalorder %s20, 1
      %p174 = scmp.ne.s32.totalorder %s169, %s171
      %p175 = scmp.eq.s32.totalorder %s20, 0
      %p176 = por %p174, %p175
      %p177 = scmp.ne.s32.totalorder %s169, %s171
      %p178 = scmp.eq.s32.totalorder %s25, 1
      %p179 = por %p177, %p178
      %p180 = scmp.ne.s32.totalorder %s171, %s172
      %p181 = scmp.eq.s32.totalorder %s25, 0
      %p182 = por %p180, %p181
      %p183 = scmp.ne.s32.totalorder %s171, %s172
      %p184 = scmp.eq.s32.totalorder %s26, 1
      %p185 = por %p183, %p184
      %p187 = scmp.ne.s32.totalorder %s172, %s186
      %p188 = scmp.eq.s32.totalorder %s26, 0
      %p189 = por %p187, %p188
      %s191 = sadd.s32 %s190, 1
      %p194 = scmp.eq.s32.totalorder %s20, 1
      %p195 = scmp.ne.s32.totalorder %s190, %s192
      %p196 = scmp.eq.s32.totalorder %s20, 0
      %p197 = por %p195, %p196
      %p198 = scmp.ne.s32.totalorder %s190, %s192
      %p199 = scmp.eq.s32.totalorder %s25, 1
      %p200 = por %p198, %p199
      %p201 = scmp.ne.s32.totalorder %s192, %s193
      %p202 = scmp.eq.s32.totalorder %s25, 0
      %p203 = por %p201, %p202
      %p204 = scmp.ne.s32.totalorder %s192, %s193
      %p205 = scmp.eq.s32.totalorder %s26, 1
      %p206 = por %p204, %p205
      %p208 = scmp.ne.s32.totalorder %s193, %s207
      %p209 = scmp.eq.s32.totalorder %s26, 0
      %p210 = por %p208, %p209
      %s212 = sadd.s32 %s211, 1
      %p215 = scmp.eq.s32.totalorder %s20, 1
      %p216 = scmp.ne.s32.totalorder %s211, %s213
      %p217 = scmp.eq.s32.totalorder %s20, 0
      %p218 = por %p216, %p217
      %p219 = scmp.ne.s32.totalorder %s211, %s213
      %p220 = scmp.eq.s32.totalorder %s25, 1
      %p221 = por %p219, %p220
      %p222 = scmp.ne.s32.totalorder %s213, %s214
      %p223 = scmp.eq.s32.totalorder %s25, 0
      %p224 = por %p222, %p223
      %p225 = scmp.ne.s32.totalorder %s213, %s214
      %p226 = scmp.eq.s32.totalorder %s26, 1
      %p227 = por %p225, %p226
      %p229 = scmp.ne.s32.totalorder %s214, %s228
      %p230 = scmp.eq.s32.totalorder %s26, 0
      %p231 = por %p229, %p230
      %s232 = ssub.s32 %s20, %s27
      %p233 = scmp.eq.s32.totalorder %s232, 0
      %s235 = sadd.s32 %s234, 1
      %s236 = scalar_select %p233, %s234, %s235
      %p239 = pneg %p233
      %p240 = scmp.eq.s32.totalorder %s20, 1
      %p241 = por %p239, %p240
      %p242 = scmp.ne.s32.totalorder %s234, %s237
      %p243 = scmp.eq.s32.totalorder %s20, 0
      %p244 = por %p242, %p243
      %p245 = scmp.ne.s32.totalorder %s234, %s237
      %p246 = scmp.eq.s32.totalorder %s25, 1
      %p247 = por %p245, %p246
      %p248 = scmp.ne.s32.totalorder %s237, %s238
      %p249 = scmp.eq.s32.totalorder %s25, 0
      %p250 = por %p248, %p249
      %p251 = scmp.ne.s32.totalorder %s237, %s238
      %p252 = scmp.eq.s32.totalorder %s26, 1
      %p253 = por %p251, %p252
      %p255 = scmp.ne.s32.totalorder %s238, %s254
      %p256 = scmp.eq.s32.totalorder %s26, 0
      %p257 = por %p255, %p256
      %s258 = ssub.s32 %s20, %s27
      %p259 = scmp.eq.s32.totalorder %s258, 0
      %s261 = sadd.s32 %s260, 1
      %s262 = scalar_select %p259, %s260, %s261
      %p265 = pneg %p259
      %p266 = scmp.eq.s32.totalorder %s20, 1
      %p267 = por %p265, %p266
      %p268 = scmp.ne.s32.totalorder %s260, %s263
      %p269 = scmp.eq.s32.totalorder %s20, 0
      %p270 = por %p268, %p269
      %p271 = scmp.ne.s32.totalorder %s260, %s263
      %p272 = scmp.eq.s32.totalorder %s25, 1
      %p273 = por %p271, %p272
      %p274 = scmp.ne.s32.totalorder %s263, %s264
      %p275 = scmp.eq.s32.totalorder %s25, 0
      %p276 = por %p274, %p275
      %p277 = scmp.ne.s32.totalorder %s263, %s264
      %p278 = scmp.eq.s32.totalorder %s26, 1
      %p279 = por %p277, %p278
      %p281 = scmp.ne.s32.totalorder %s264, %s280
      %p282 = scmp.eq.s32.totalorder %s26, 0
      %p283 = por %p281, %p282
      %p284 = scmp.le.s32.totalorder 1, %s20
      %p285 = scmp.lt.s32.totalorder %s20, 3
      %p286 = pnand %p284, %p285
      %p287 = pneg %p286
      // Predicated region
      $region9: #{tpu_custom_call.1} parent=5 // pred_check
        _
      $region10: #{tpu_custom_call.1} parent=5 // pred_check_branch
        %289 = sbr.rel (%p286) target = $region12
      $region11: #{tpu_custom_call.1} parent=5 // pred_region
        %s290 = ssub.s32 %s20, 1
        // Predicated region
        $region13: #{tpu_custom_call.1} parent=11 // pred_check
          %p291 = pneg %p119
        $region14: #{tpu_custom_call.1} parent=11 // pred_check_branch
          %293 = sbr.rel (%p291) target = $region16
        $region15: #{tpu_custom_call.1} parent=11 // pred_region
          _
        $region16: #{tpu_custom_call.1} parent=11 // pred_fallthru
          _
        // Predicated region
        $region17: #{tpu_custom_call.1} parent=11 // pred_check
          %p294 = pneg %p140
        $region18: #{tpu_custom_call.1} parent=11 // pred_check_branch
          %296 = sbr.rel (%p294) target = $region20
        $region19: #{tpu_custom_call.1} parent=11 // pred_region
          _
        $region20: #{tpu_custom_call.1} parent=11 // pred_fallthru
          _
        // Predicated region
        $region21: #{tpu_custom_call.1} parent=11 // pred_check
          %p297 = pneg %p161
        $region22: #{tpu_custom_call.1} parent=11 // pred_check_branch
          %299 = sbr.rel (%p297) target = $region24
        $region23: #{tpu_custom_call.1} parent=11 // pred_region
          _
        $region24: #{tpu_custom_call.1} parent=11 // pred_fallthru
          _
        // Predicated region
        $region25: #{tpu_custom_call.1} parent=11 // pred_check
          %p300 = pneg %p182
        $region26: #{tpu_custom_call.1} parent=11 // pred_check_branch
          %302 = sbr.rel (%p300) target = $region28
        $region27: #{tpu_custom_call.1} parent=11 // pred_region
          _
        $region28: #{tpu_custom_call.1} parent=11 // pred_fallthru
          _
        // Predicated region
        $region29: #{tpu_custom_call.1} parent=11 // pred_check
          %p303 = pneg %p203
        $region30: #{tpu_custom_call.1} parent=11 // pred_check_branch
          %305 = sbr.rel (%p303) target = $region32
        $region31: #{tpu_custom_call.1} parent=11 // pred_region
          _
        $region32: #{tpu_custom_call.1} parent=11 // pred_fallthru
          _
        // Predicated region
        $region33: #{tpu_custom_call.1} parent=11 // pred_check
          %p306 = pneg %p224
        $region34: #{tpu_custom_call.1} parent=11 // pred_check_branch
          %308 = sbr.rel (%p306) target = $region36
        $region35: #{tpu_custom_call.1} parent=11 // pred_region
          _
        $region36: #{tpu_custom_call.1} parent=11 // pred_fallthru
          _
      $region12: #{tpu_custom_call.1} parent=5 // pred_fallthru
        _
      %p309 = scmp.lt.s32.totalorder %s20, 2
      // Predicated region
      $region37: #{tpu_custom_call.1} parent=5 // pred_check
        %p310 = pneg %p309
      $region38: #{tpu_custom_call.1} parent=5 // pred_check_branch
        %312 = sbr.rel (%p310) target = $region40
      $region39: #{tpu_custom_call.1} parent=5 // pred_region
        // Predicated region
        $region41: #{tpu_custom_call.1} parent=39 // pred_check
          %p313 = pneg %p40
        $region42: #{tpu_custom_call.1} parent=39 // pred_check_branch
          %315 = sbr.rel (%p313) target = $region44
        $region43: #{tpu_custom_call.1} parent=39 // pred_region
          %s316 = smul.u32 4, %s20
          %p317 = scmp.lt.s32.totalorder %s316, 7
          %s318 = scalar_select %p317, %s316, 7
          %s319 = smul.addr %s318, 2
          %s320 = smul.addr %s319, 8
          %s321 = scalar_lea.vmem %s0, %s320
          %s322 = smul.u32 4, %s20
        $region44: #{tpu_custom_call.1} parent=39 // pred_fallthru
          _
        // Predicated region
        $region45: #{tpu_custom_call.1} parent=39 // pred_check
          %p323 = pneg %p66
        $region46: #{tpu_custom_call.1} parent=39 // pred_check_branch
          %325 = sbr.rel (%p323) target = $region48
        $region47: #{tpu_custom_call.1} parent=39 // pred_region
          %s326 = smul.u32 4, %s20
          %p327 = scmp.lt.s32.totalorder %s326, 7
          %s328 = scalar_select %p327, %s326, 7
          %s329 = smul.addr %s328, 2
          %s330 = smul.addr %s329, 8
          %s331 = scalar_lea.vmem %s1, %s330
          %s332 = smul.u32 4, %s20
        $region48: #{tpu_custom_call.1} parent=39 // pred_fallthru
          _
        // Predicated region
        $region49: #{tpu_custom_call.1} parent=39 // pred_check
          %p333 = pneg %p92
        $region50: #{tpu_custom_call.1} parent=39 // pred_check_branch
          %335 = sbr.rel (%p333) target = $region52
        $region51: #{tpu_custom_call.1} parent=39 // pred_region
          %s336 = smul.u32 4, %s20
          %p337 = scmp.lt.s32.totalorder %s336, 7
          %s338 = scalar_select %p337, %s336, 7
          %s339 = smul.addr %s338, 2
          %s340 = smul.addr %s339, 8
          %s341 = scalar_lea.vmem %s2, %s340
          %s342 = smul.u32 4, %s20
        $region52: #{tpu_custom_call.1} parent=39 // pred_fallthru
          _
      $region40: #{tpu_custom_call.1} parent=5 // pred_fallthru
        _
      %p343 = scmp.le.s32.totalorder 1, %s20
      %p344 = scmp.lt.s32.totalorder %s20, 3
      %p345 = pnand %p343, %p344
      %p346 = pneg %p345
      // Predicated region
      $region53: #{tpu_custom_call.1} parent=5 // pred_check
        _
      $region54: #{tpu_custom_call.1} parent=5 // pred_check_branch
        %348 = sbr.rel (%p345) target = $region56
      $region55: #{tpu_custom_call.1} parent=5 // pred_region
        %s349 = ssub.s32 %s20, 1
        %s350 = smul.u32 4, %s25
        %p351 = scmp.lt.s32.totalorder %s350, 7
        %s352 = scalar_select %p351, %s350, 7
        %s353 = smul.addr %s352, 2
        %s354 = smul.addr %s353, 8
        %s355 = scalar_lea.vmem %s0, %s354
        %p356 = pneg %p46
        %p357 = pneg %p43
        %s358 = smul.u32 4, %s25
        %p359 = scmp.lt.s32.totalorder %s358, 7
        %s360 = scalar_select %p359, %s358, 7
        %s361 = smul.addr %s360, 2
        %s362 = smul.addr %s361, 8
        %s363 = scalar_lea.vmem %s1, %s362
        %p364 = pneg %p72
        %p365 = pneg %p69
        %s366 = smul.u32 4, %s25
        %p367 = scmp.lt.s32.totalorder %s366, 7
        %s368 = scalar_select %p367, %s366, 7
        %s369 = smul.addr %s368, 2
        %s370 = smul.addr %s369, 8
        %s371 = scalar_lea.vmem %s2, %s370
        %p372 = pneg %p98
        %p373 = pneg %p95
        %p374 = pneg %p119
        %p375 = pneg %p116
        %p376 = pneg %p140
        %p377 = pneg %p137
        %p378 = pneg %p161
        %p379 = pneg %p158
        %p380 = pneg %p182
        %p381 = pneg %p179
        %p382 = pneg %p203
        %p383 = pneg %p200
        %p384 = pneg %p224
        %p385 = pneg %p221
        %p386 = pneg %p250
        %p387 = pneg %p247
        %s388 = sand.u32 %s237, 1
        %s389 = scalar_lea.sflag [#allocation3], %s388
        %s390 = sand.u32 %s237, 1
        %s391 = smul.addr %s390, 64
        %s392 = scalar_lea.vmem [#allocation2], %s391
        %p393 = pneg %p276
        %p394 = pneg %p273
        %s395 = smul.u32 4, %s25
        %p396 = scmp.lt.s32.totalorder %s395, 7
        %s397 = scalar_select %p396, %s395, 7
        %s398 = smul.addr %s397, 2
        %s399 = smul.addr %s398, 8
        %s400 = scalar_lea.vmem %s10, %s399
        %s401 = smul.u32 4, %s25
        %p402 = scmp.lt.s32.totalorder %s401, 7
        %s403 = scalar_select %p402, %s401, 7
        %s404 = smul.addr %s403, 2
        %s405 = smul.addr %s404, 8
        %s406 = scalar_lea.vmem %s0, %s405
        %s407 = smul.u32 4, %s25
        %s408 = smul.u32 4, %s25
        %p409 = scmp.lt.s32.totalorder %s408, 7
        %s410 = scalar_select %p409, %s408, 7
        %s411 = smul.addr %s410, 2
        %s412 = smul.addr %s411, 8
        %s413 = scalar_lea.vmem %s1, %s412
        %s414 = smul.u32 4, %s25
        %s415 = smul.u32 4, %s25
        %p416 = scmp.lt.s32.totalorder %s415, 7
        %s417 = scalar_select %p416, %s415, 7
        %s418 = smul.addr %s417, 2
        %s419 = smul.addr %s418, 8
        %s420 = scalar_lea.vmem %s2, %s419
        %s421 = smul.u32 4, %s25
        %s422 = smul.u32 4, %s25
        %s423 = smul.u32 4, %s25
        %p424 = scmp.lt.s32.totalorder %s423, 7
        %s425 = scalar_select %p424, %s423, 7
        %s426 = smul.addr %s425, 2
        %s427 = smul.addr %s426, 8
        %s428 = scalar_lea.vmem %s10, %s427
        %s429 = smul.u32 4, %s25
        %v430 = vld [vmem:[%s413] sm:$0xff]
        %v431 = vld [vmem:[%s413 + $0x8] sm:$0xff]
        %v432 = vld [vmem:[%s413 + $0x10] sm:$0xff]
        %v433 = vld [vmem:[%s413 + $0x18] sm:$0xff]
        %v434 = vld [vmem:[%s413 + $0x20] sm:$0xff]
        %v435 = vld [vmem:[%s413 + $0x28] sm:$0xff]
        %v436 = vld [vmem:[%s413 + $0x30] sm:$0xff]
        %v437 = vld [vmem:[%s413 + $0x38] sm:$0xff]
        %v438 = vld [vmem:[%s3] sm:$0xff]
        %vm439 = vcmask 64512
        %v441 = vsel %vm439, %v430, 0
        %v444 = vsel %vm439, %v431, 0
        %v447 = vsel %vm439, %v432, 0
        %v450 = vsel %vm439, %v433, 0
        %v453 = vsel %vm439, %v434, 0
        %v456 = vsel %vm439, %v435, 0
        %v459 = vsel %vm439, %v436, 0
        %v462 = vsel %vm439, %v437, 0
        %464 = vmatpush.msra.mxu0 0.0
        %465 = vmatpush.msra.mxu0 0.0
        %466 = vmatpush.msra.mxu0 0.0
        %467 = vmatpush.msra.mxu0 0.0
        %468 = vmatpush.msra.mxu0 0.0
        %469 = vmatpush.msra.mxu0 0.0
        %470 = vmatpush.msra.mxu0 0.0
        %471 = vmatpush.msra.mxu0 0.0
        %472 = vmatpush.msra.mxu0 0.0
        %473 = vmatpush.msra.mxu0 0.0
        %474 = vmatpush.msra.mxu0 0.0
        %475 = vmatpush.msra.mxu0 0.0
        %476 = vmatpush.msra.mxu0 0.0
        %477 = vmatpush.msra.mxu0 0.0
        %478 = vmatpush.msra.mxu0 0.0
        %479 = vmatpush.msra.mxu0 %v438
        %480 = vmatmul.f32.gmra.mxu0 %v441
        %v481 = vpop.f32.mrf.mxu0
        %v482 = vadd.f32 0.0, %v481
        %483 = vmatmul.f32.gmra.mxu0 %v444
        %v484 = vpop.f32.mrf.mxu0
        %v485 = vadd.f32 0.0, %v484
        %486 = vmatmul.f32.gmra.mxu0 %v447
        %v487 = vpop.f32.mrf.mxu0
        %v488 = vadd.f32 0.0, %v487
        %489 = vmatmul.f32.gmra.mxu0 %v450
        %v490 = vpop.f32.mrf.mxu0
        %v491 = vadd.f32 0.0, %v490
        %492 = vmatmul.f32.gmra.mxu0 %v453
        %v493 = vpop.f32.mrf.mxu0
        %v494 = vadd.f32 0.0, %v493
        %495 = vmatmul.f32.gmra.mxu0 %v456
        %v496 = vpop.f32.mrf.mxu0
        %v497 = vadd.f32 0.0, %v496
        %498 = vmatmul.f32.gmra.mxu0 %v459
        %v499 = vpop.f32.mrf.mxu0
        %v500 = vadd.f32 0.0, %v499
        %501 = vmatmul.f32.gmra.mxu0 %v462
        %v502 = vpop.f32.mrf.mxu0
        %v503 = vadd.f32 0.0, %v502
        %504 = vdwg.mxu0
        %v505 = vtanh.pop %v482
        %v506 = vtanh.pop %v485
        %v507 = vtanh.pop %v488
        %v508 = vtanh.pop %v491
        %v509 = vtanh.pop %v494
        %v510 = vtanh.pop %v497
        %v511 = vtanh.pop %v500
        %v512 = vtanh.pop %v503
        %513 = vst.msk [vmem:[%s428] sm:$0xff] %vm439, %v505
        %514 = vst.msk [vmem:[%s428 + $0x8] sm:$0xff] %vm439, %v506
        %515 = vst.msk [vmem:[%s428 + $0x10] sm:$0xff] %vm439, %v507
        %516 = vst.msk [vmem:[%s428 + $0x18] sm:$0xff] %vm439, %v508
        %517 = vst.msk [vmem:[%s428 + $0x20] sm:$0xff] %vm439, %v509
        %518 = vst.msk [vmem:[%s428 + $0x28] sm:$0xff] %vm439, %v510
        %519 = vst.msk [vmem:[%s428 + $0x30] sm:$0xff] %vm439, %v511
        %520 = vst.msk [vmem:[%s428 + $0x38] sm:$0xff] %vm439, %v512
        %v522 = vsel %vm439, %v505, 0
        %v525 = vsel %vm439, %v506, 0
        %527 = vmatpush.xpose.msra.mxu0 0.0
        %528 = vmatpush.xpose.msra.mxu0 0.0
        %529 = vmatpush.xpose.msra.mxu0 0.0
        %530 = vmatpush.xpose.msra.mxu0 0.0
        %531 = vmatpush.xpose.msra.mxu0 0.0
        %532 = vmatpush.xpose.msra.mxu0 0.0
        %533 = vmatpush.xpose.msra.mxu0 0.0
        %534 = vmatpush.xpose.msra.mxu0 0.0
        %535 = vmatpush.xpose.msra.mxu0 0.0
        %536 = vmatpush.xpose.msra.mxu0 0.0
        %537 = vmatpush.xpose.msra.mxu0 0.0
        %538 = vmatpush.xpose.msra.mxu0 0.0
        %539 = vmatpush.xpose.msra.mxu0 0.0
        %540 = vmatpush.xpose.msra.mxu0 0.0
        %541 = vmatpush.xpose.msra.mxu0 %v525
        %542 = vmatpush.xpose.msra.mxu0 %v522
        %543 = vmatmul.f32.gmra.mxu0 %v522
        %v544 = vpop.f32.mrf.mxu0
        %v545 = vadd.f32 0.0, %v544
        %546 = vmatmul.f32.gmra.mxu0 %v525
        %v547 = vpop.f32.mrf.mxu0
        %v548 = vadd.f32 0.0, %v547
        %549 = vdwg.mxu0
        %v551 = vsel %vm439, %v507, 0
        %v554 = vsel %vm439, %v508, 0
        %556 = vmatpush.xpose.msra.mxu0 0.0
        %557 = vmatpush.xpose.msra.mxu0 0.0
        %558 = vmatpush.xpose.msra.mxu0 0.0
        %559 = vmatpush.xpose.msra.mxu0 0.0
        %560 = vmatpush.xpose.msra.mxu0 0.0
        %561 = vmatpush.xpose.msra.mxu0 0.0
        %562 = vmatpush.xpose.msra.mxu0 0.0
        %563 = vmatpush.xpose.msra.mxu0 0.0
        %564 = vmatpush.xpose.msra.mxu0 0.0
        %565 = vmatpush.xpose.msra.mxu0 0.0
        %566 = vmatpush.xpose.msra.mxu0 0.0
        %567 = vmatpush.xpose.msra.mxu0 0.0
        %568 = vmatpush.xpose.msra.mxu0 0.0
        %569 = vmatpush.xpose.msra.mxu0 0.0
        %570 = vmatpush.xpose.msra.mxu0 %v554
        %571 = vmatpush.xpose.msra.mxu0 %v551
        %572 = vmatmul.f32.gmra.mxu0 %v551
        %v573 = vpop.f32.mrf.mxu0
        %v574 = vadd.f32 0.0, %v573
        %575 = vmatmul.f32.gmra.mxu0 %v554
        %v576 = vpop.f32.mrf.mxu0
        %v577 = vadd.f32 0.0, %v576
        %578 = vdwg.mxu0
        %v580 = vsel %vm439, %v509, 0
        %v583 = vsel %vm439, %v510, 0
        %585 = vmatpush.xpose.msra.mxu0 0.0
        %586 = vmatpush.xpose.msra.mxu0 0.0
        %587 = vmatpush.xpose.msra.mxu0 0.0
        %588 = vmatpush.xpose.msra.mxu0 0.0
        %589 = vmatpush.xpose.msra.mxu0 0.0
        %590 = vmatpush.xpose.msra.mxu0 0.0
        %591 = vmatpush.xpose.msra.mxu0 0.0
        %592 = vmatpush.xpose.msra.mxu0 0.0
        %593 = vmatpush.xpose.msra.mxu0 0.0
        %594 = vmatpush.xpose.msra.mxu0 0.0
        %595 = vmatpush.xpose.msra.mxu0 0.0
        %596 = vmatpush.xpose.msra.mxu0 0.0
        %597 = vmatpush.xpose.msra.mxu0 0.0
        %598 = vmatpush.xpose.msra.mxu0 0.0
        %599 = vmatpush.xpose.msra.mxu0 %v583
        %600 = vmatpush.xpose.msra.mxu0 %v580
        %601 = vmatmul.f32.gmra.mxu0 %v580
        %v602 = vpop.f32.mrf.mxu0
        %v603 = vadd.f32 0.0, %v602
        %604 = vmatmul.f32.gmra.mxu0 %v583
        %v605 = vpop.f32.mrf.mxu0
        %v606 = vadd.f32 0.0, %v605
        %607 = vdwg.mxu0
        %v609 = vsel %vm439, %v511, 0
        %v612 = vsel %vm439, %v512, 0
        %614 = vmatpush.xpose.msra.mxu0 0.0
        %615 = vmatpush.xpose.msra.mxu0 0.0
        %616 = vmatpush.xpose.msra.mxu0 0.0
        %617 = vmatpush.xpose.msra.mxu0 0.0
        %618 = vmatpush.xpose.msra.mxu0 0.0
        %619 = vmatpush.xpose.msra.mxu0 0.0
        %620 = vmatpush.xpose.msra.mxu0 0.0
        %621 = vmatpush.xpose.msra.mxu0 0.0
        %622 = vmatpush.xpose.msra.mxu0 0.0
        %623 = vmatpush.xpose.msra.mxu0 0.0
        %624 = vmatpush.xpose.msra.mxu0 0.0
        %625 = vmatpush.xpose.msra.mxu0 0.0
        %626 = vmatpush.xpose.msra.mxu0 0.0
        %627 = vmatpush.xpose.msra.mxu0 0.0
        %628 = vmatpush.xpose.msra.mxu0 %v612
        %629 = vmatpush.xpose.msra.mxu0 %v609
        %630 = vmatmul.f32.gmra.mxu0 %v609
        %v631 = vpop.f32.mrf.mxu0
        %v632 = vadd.f32 0.0, %v631
        %633 = vmatmul.f32.gmra.mxu0 %v612
        %v634 = vpop.f32.mrf.mxu0
        %v635 = vadd.f32 0.0, %v634
        %636 = vdwg.mxu0
        %v637 = vxor.u32 %v545, 2147483648
        %v638 = vxor.u32 %v548, 2147483648
        %v639 = vxor.u32 %v574, 2147483648
        %v640 = vxor.u32 %v577, 2147483648
        %v641 = vxor.u32 %v603, 2147483648
        %v642 = vxor.u32 %v606, 2147483648
        %v643 = vxor.u32 %v632, 2147483648
        %v644 = vxor.u32 %v635, 2147483648
        %v645 = vmul.f32 %v637, 1.442695
        %v646 = vpow.pop %v645
        %v647 = vmul.f32 %v638, 1.442695
        %v648 = vpow.pop %v647
        %v649 = vmul.f32 %v639, 1.442695
        %v650 = vpow.pop %v649
        %v651 = vmul.f32 %v640, 1.442695
        %v652 = vpow.pop %v651
        %v653 = vmul.f32 %v641, 1.442695
        %v654 = vpow.pop %v653
        %v655 = vmul.f32 %v642, 1.442695
        %v656 = vpow.pop %v655
        %v657 = vmul.f32 %v643, 1.442695
        %v658 = vpow.pop %v657
        %v659 = vmul.f32 %v644, 1.442695
        %v660 = vpow.pop %v659
        %v661 = vadd.f32 %v646, 1.0
        %v662 = vadd.f32 %v648, 1.0
        %v663 = vadd.f32 %v650, 1.0
        %v664 = vadd.f32 %v652, 1.0
        %v665 = vadd.f32 %v654, 1.0
        %v666 = vadd.f32 %v656, 1.0
        %v667 = vadd.f32 %v658, 1.0
        %v668 = vadd.f32 %v660, 1.0
        %v669 = vrcp.pop %v661
        %v670 = vmul.f32 %v661, %v669
        %v671 = vsub.f32 1.0, %v670
        %v672 = vmul.f32 %v669, %v671
        %v673 = vadd.f32 %v669, %v672
        %vm674 = vweird.f32 %v661
        %vm675 = vweird.f32 %v669
        %vm676 = vmor %vm674, %vm675
        %v677 = vsel %vm676, %v669, %v673
        %v678 = vand.u32 2147483647, %v661
        %vm679 = vcmp.eq.f32.partialorder %v678, 8.507059e+37
        %v680 = vand.u32 %v661, 2147483648
        %v681 = vor.u32 1.1754944e-38, %v680
        %v682 = vsel %vm679, %v681, %v677
        %v683 = vmul.f32 1.0, %v682
        %v684 = vrcp.pop %v662
        %v685 = vmul.f32 %v662, %v684
        %v686 = vsub.f32 1.0, %v685
        %v687 = vmul.f32 %v684, %v686
        %v688 = vadd.f32 %v684, %v687
        %vm689 = vweird.f32 %v662
        %vm690 = vweird.f32 %v684
        %vm691 = vmor %vm689, %vm690
        %v692 = vsel %vm691, %v684, %v688
        %v693 = vand.u32 2147483647, %v662
        %vm694 = vcmp.eq.f32.partialorder %v693, 8.507059e+37
        %v695 = vand.u32 %v662, 2147483648
        %v696 = vor.u32 1.1754944e-38, %v695
        %v697 = vsel %vm694, %v696, %v692
        %v698 = vmul.f32 1.0, %v697
        %v699 = vrcp.pop %v663
        %v700 = vmul.f32 %v663, %v699
        %v701 = vsub.f32 1.0, %v700
        %v702 = vmul.f32 %v699, %v701
        %v703 = vadd.f32 %v699, %v702
        %vm704 = vweird.f32 %v663
        %vm705 = vweird.f32 %v699
        %vm706 = vmor %vm704, %vm705
        %v707 = vsel %vm706, %v699, %v703
        %v708 = vand.u32 2147483647, %v663
        %vm709 = vcmp.eq.f32.partialorder %v708, 8.507059e+37
        %v710 = vand.u32 %v663, 2147483648
        %v711 = vor.u32 1.1754944e-38, %v710
        %v712 = vsel %vm709, %v711, %v707
        %v713 = vmul.f32 1.0, %v712
        %v714 = vrcp.pop %v664
        %v715 = vmul.f32 %v664, %v714
        %v716 = vsub.f32 1.0, %v715
        %v717 = vmul.f32 %v714, %v716
        %v718 = vadd.f32 %v714, %v717
        %vm719 = vweird.f32 %v664
        %vm720 = vweird.f32 %v714
        %vm721 = vmor %vm719, %vm720
        %v722 = vsel %vm721, %v714, %v718
        %v723 = vand.u32 2147483647, %v664
        %vm724 = vcmp.eq.f32.partialorder %v723, 8.507059e+37
        %v725 = vand.u32 %v664, 2147483648
        %v726 = vor.u32 1.1754944e-38, %v725
        %v727 = vsel %vm724, %v726, %v722
        %v728 = vmul.f32 1.0, %v727
        %v729 = vrcp.pop %v665
        %v730 = vmul.f32 %v665, %v729
        %v731 = vsub.f32 1.0, %v730
        %v732 = vmul.f32 %v729, %v731
        %v733 = vadd.f32 %v729, %v732
        %vm734 = vweird.f32 %v665
        %vm735 = vweird.f32 %v729
        %vm736 = vmor %vm734, %vm735
        %v737 = vsel %vm736, %v729, %v733
        %v738 = vand.u32 2147483647, %v665
        %vm739 = vcmp.eq.f32.partialorder %v738, 8.507059e+37
        %v740 = vand.u32 %v665, 2147483648
        %v741 = vor.u32 1.1754944e-38, %v740
        %v742 = vsel %vm739, %v741, %v737
        %v743 = vmul.f32 1.0, %v742
        %v744 = vrcp.pop %v666
        %v745 = vmul.f32 %v666, %v744
        %v746 = vsub.f32 1.0, %v745
        %v747 = vmul.f32 %v744, %v746
        %v748 = vadd.f32 %v744, %v747
        %vm749 = vweird.f32 %v666
        %vm750 = vweird.f32 %v744
        %vm751 = vmor %vm749, %vm750
        %v752 = vsel %vm751, %v744, %v748
        %v753 = vand.u32 2147483647, %v666
        %vm754 = vcmp.eq.f32.partialorder %v753, 8.507059e+37
        %v755 = vand.u32 %v666, 2147483648
        %v756 = vor.u32 1.1754944e-38, %v755
        %v757 = vsel %vm754, %v756, %v752
        %v758 = vmul.f32 1.0, %v757
        %v759 = vrcp.pop %v667
        %v760 = vmul.f32 %v667, %v759
        %v761 = vsub.f32 1.0, %v760
        %v762 = vmul.f32 %v759, %v761
        %v763 = vadd.f32 %v759, %v762
        %vm764 = vweird.f32 %v667
        %vm765 = vweird.f32 %v759
        %vm766 = vmor %vm764, %vm765
        %v767 = vsel %vm766, %v759, %v763
        %v768 = vand.u32 2147483647, %v667
        %vm769 = vcmp.eq.f32.partialorder %v768, 8.507059e+37
        %v770 = vand.u32 %v667, 2147483648
        %v771 = vor.u32 1.1754944e-38, %v770
        %v772 = vsel %vm769, %v771, %v767
        %v773 = vmul.f32 1.0, %v772
        %v774 = vrcp.pop %v668
        %v775 = vmul.f32 %v668, %v774
        %v776 = vsub.f32 1.0, %v775
        %v777 = vmul.f32 %v774, %v776
        %v778 = vadd.f32 %v774, %v777
        %vm779 = vweird.f32 %v668
        %vm780 = vweird.f32 %v774
        %vm781 = vmor %vm779, %vm780
        %v782 = vsel %vm781, %v774, %v778
        %v783 = vand.u32 2147483647, %v668
        %vm784 = vcmp.eq.f32.partialorder %v783, 8.507059e+37
        %v785 = vand.u32 %v668, 2147483648
        %v786 = vor.u32 1.1754944e-38, %v785
        %v787 = vsel %vm784, %v786, %v782
        %v788 = vmul.f32 1.0, %v787
        %v789 = vld [vmem:[%s420] sm:$0xff]
        %v790 = vld [vmem:[%s420 + $0x8] sm:$0xff]
        %v791 = vld [vmem:[%s420 + $0x10] sm:$0xff]
        %v792 = vld [vmem:[%s420 + $0x18] sm:$0xff]
        %v793 = vld [vmem:[%s420 + $0x20] sm:$0xff]
        %v794 = vld [vmem:[%s420 + $0x28] sm:$0xff]
        %v795 = vld [vmem:[%s420 + $0x30] sm:$0xff]
        %v796 = vld [vmem:[%s420 + $0x38] sm:$0xff]
        %v797 = vmul.f32 %v789, %v683
        %v798 = vmul.f32 %v790, %v698
        %v799 = vmul.f32 %v791, %v713
        %v800 = vmul.f32 %v792, %v728
        %v801 = vmul.f32 %v793, %v743
        %v802 = vmul.f32 %v794, %v758
        %v803 = vmul.f32 %v795, %v773
        %v804 = vmul.f32 %v796, %v788
        %v805 = vld [vmem:[%s406] sm:$0xff]
        %v806 = vld [vmem:[%s406 + $0x8] sm:$0xff]
        %v807 = vld [vmem:[%s406 + $0x10] sm:$0xff]
        %v808 = vld [vmem:[%s406 + $0x18] sm:$0xff]
        %v809 = vld [vmem:[%s406 + $0x20] sm:$0xff]
        %v810 = vld [vmem:[%s406 + $0x28] sm:$0xff]
        %v811 = vld [vmem:[%s406 + $0x30] sm:$0xff]
        %v812 = vld [vmem:[%s406 + $0x38] sm:$0xff]
        %v813 = vld [vmem:[%s4] sm:$0xff]
        %v814 = vld [vmem:[%s5] sm:$0x1]
        %v816 = vperm.slane %v814, 0
        %v819 = vsel %vm439, %v805, 0
        %v822 = vsel %vm439, %v806, 0
        %v825 = vsel %vm439, %v807, 0
        %v828 = vsel %vm439, %v808, 0
        %v831 = vsel %vm439, %v809, 0
        %v834 = vsel %vm439, %v810, 0
        %v837 = vsel %vm439, %v811, 0
        %v840 = vsel %vm439, %v812, 0
        %842 = vmatpush.msra.mxu0 0.0
        %843 = vmatpush.msra.mxu0 0.0
        %844 = vmatpush.msra.mxu0 0.0
        %845 = vmatpush.msra.mxu0 0.0
        %846 = vmatpush.msra.mxu0 0.0
        %847 = vmatpush.msra.mxu0 0.0
        %848 = vmatpush.msra.mxu0 0.0
        %849 = vmatpush.msra.mxu0 0.0
        %850 = vmatpush.msra.mxu0 0.0
        %851 = vmatpush.msra.mxu0 0.0
        %852 = vmatpush.msra.mxu0 0.0
        %853 = vmatpush.msra.mxu0 0.0
        %854 = vmatpush.msra.mxu0 0.0
        %855 = vmatpush.msra.mxu0 0.0
        %856 = vmatpush.msra.mxu0 0.0
        %857 = vmatpush.msra.mxu0 %v813
        %858 = vmatmul.f32.gmra.mxu0 %v819
        %v859 = vpop.f32.mrf.mxu0
        %v860 = vadd.f32 %v816, %v859
        %861 = vmatmul.f32.gmra.mxu0 %v822
        %v862 = vpop.f32.mrf.mxu0
        %v863 = vadd.f32 %v816, %v862
        %864 = vmatmul.f32.gmra.mxu0 %v825
        %v865 = vpop.f32.mrf.mxu0
        %v866 = vadd.f32 %v816, %v865
        %867 = vmatmul.f32.gmra.mxu0 %v828
        %v868 = vpop.f32.mrf.mxu0
        %v869 = vadd.f32 %v816, %v868
        %870 = vmatmul.f32.gmra.mxu0 %v831
        %v871 = vpop.f32.mrf.mxu0
        %v872 = vadd.f32 %v816, %v871
        %873 = vmatmul.f32.gmra.mxu0 %v834
        %v874 = vpop.f32.mrf.mxu0
        %v875 = vadd.f32 %v816, %v874
        %876 = vmatmul.f32.gmra.mxu0 %v837
        %v877 = vpop.f32.mrf.mxu0
        %v878 = vadd.f32 %v816, %v877
        %879 = vmatmul.f32.gmra.mxu0 %v840
        %v880 = vpop.f32.mrf.mxu0
        %v881 = vadd.f32 %v816, %v880
        %882 = vdwg.mxu0
        %vm883 = vcmask 130048
        %v885 = vsel %vm883, %v797, 0
        %v888 = vsel %vm883, %v798, 0
        %890 = vmatpush.msra.mxu0 0.0
        %891 = vmatpush.msra.mxu0 0.0
        %892 = vmatpush.msra.mxu0 0.0
        %893 = vmatpush.msra.mxu0 0.0
        %894 = vmatpush.msra.mxu0 0.0
        %895 = vmatpush.msra.mxu0 0.0
        %896 = vmatpush.msra.mxu0 0.0
        %897 = vmatpush.msra.mxu0 0.0
        %898 = vmatpush.msra.mxu0 0.0
        %899 = vmatpush.msra.mxu0 0.0
        %900 = vmatpush.msra.mxu0 0.0
        %901 = vmatpush.msra.mxu0 0.0
        %902 = vmatpush.msra.mxu0 0.0
        %903 = vmatpush.msra.mxu0 0.0
        %904 = vmatpush.msra.mxu0 %v863
        %905 = vmatpush.msra.mxu0 %v860
        %906 = vmatmul.f32.gmra.mxu0 %v885
        %v907 = vpop.f32.mrf.mxu0
        %v908 = vadd.f32 0.0, %v907
        %909 = vmatmul.f32.gmra.mxu0 %v888
        %v910 = vpop.f32.mrf.mxu0
        %v911 = vadd.f32 0.0, %v910
        %912 = vdwg.mxu0
        %v914 = vsel %vm883, %v799, 0
        %v917 = vsel %vm883, %v800, 0
        %919 = vmatpush.msra.mxu0 0.0
        %920 = vmatpush.msra.mxu0 0.0
        %921 = vmatpush.msra.mxu0 0.0
        %922 = vmatpush.msra.mxu0 0.0
        %923 = vmatpush.msra.mxu0 0.0
        %924 = vmatpush.msra.mxu0 0.0
        %925 = vmatpush.msra.mxu0 0.0
        %926 = vmatpush.msra.mxu0 0.0
        %927 = vmatpush.msra.mxu0 0.0
        %928 = vmatpush.msra.mxu0 0.0
        %929 = vmatpush.msra.mxu0 0.0
        %930 = vmatpush.msra.mxu0 0.0
        %931 = vmatpush.msra.mxu0 0.0
        %932 = vmatpush.msra.mxu0 0.0
        %933 = vmatpush.msra.mxu0 %v869
        %934 = vmatpush.msra.mxu0 %v866
        %935 = vmatmul.f32.gmra.mxu0 %v914
        %v936 = vpop.f32.mrf.mxu0
        %v937 = vadd.f32 0.0, %v936
        %938 = vmatmul.f32.gmra.mxu0 %v917
        %v939 = vpop.f32.mrf.mxu0
        %v940 = vadd.f32 0.0, %v939
        %941 = vdwg.mxu0
        %v943 = vsel %vm883, %v801, 0
        %v946 = vsel %vm883, %v802, 0
        %948 = vmatpush.msra.mxu0 0.0
        %949 = vmatpush.msra.mxu0 0.0
        %950 = vmatpush.msra.mxu0 0.0
        %951 = vmatpush.msra.mxu0 0.0
        %952 = vmatpush.msra.mxu0 0.0
        %953 = vmatpush.msra.mxu0 0.0
        %954 = vmatpush.msra.mxu0 0.0
        %955 = vmatpush.msra.mxu0 0.0
        %956 = vmatpush.msra.mxu0 0.0
        %957 = vmatpush.msra.mxu0 0.0
        %958 = vmatpush.msra.mxu0 0.0
        %959 = vmatpush.msra.mxu0 0.0
        %960 = vmatpush.msra.mxu0 0.0
        %961 = vmatpush.msra.mxu0 0.0
        %962 = vmatpush.msra.mxu0 %v875
        %963 = vmatpush.msra.mxu0 %v872
        %964 = vmatmul.f32.gmra.mxu0 %v943
        %v965 = vpop.f32.mrf.mxu0
        %v966 = vadd.f32 0.0, %v965
        %967 = vmatmul.f32.gmra.mxu0 %v946
        %v968 = vpop.f32.mrf.mxu0
        %v969 = vadd.f32 0.0, %v968
        %970 = vdwg.mxu0
        %v972 = vsel %vm883, %v803, 0
        %v975 = vsel %vm883, %v804, 0
        %977 = vmatpush.msra.mxu0 0.0
        %978 = vmatpush.msra.mxu0 0.0
        %979 = vmatpush.msra.mxu0 0.0
        %980 = vmatpush.msra.mxu0 0.0
        %981 = vmatpush.msra.mxu0 0.0
        %982 = vmatpush.msra.mxu0 0.0
        %983 = vmatpush.msra.mxu0 0.0
        %984 = vmatpush.msra.mxu0 0.0
        %985 = vmatpush.msra.mxu0 0.0
        %986 = vmatpush.msra.mxu0 0.0
        %987 = vmatpush.msra.mxu0 0.0
        %988 = vmatpush.msra.mxu0 0.0
        %989 = vmatpush.msra.mxu0 0.0
        %990 = vmatpush.msra.mxu0 0.0
        %991 = vmatpush.msra.mxu0 %v881
        %992 = vmatpush.msra.mxu0 %v878
        %993 = vmatmul.f32.gmra.mxu0 %v972
        %v994 = vpop.f32.mrf.mxu0
        %v995 = vadd.f32 0.0, %v994
        %996 = vmatmul.f32.gmra.mxu0 %v975
        %v997 = vpop.f32.mrf.mxu0
        %v998 = vadd.f32 0.0, %v997
        %999 = vdwg.mxu0
        %v1000 = vld [vmem:[%s6] sm:$0xff]
        %v1001 = vld [vmem:[%s6 + $0x8] sm:$0xff]
        %v1002 = vld [vmem:[%s6 + $0x10] sm:$0xff]
        %v1003 = vld [vmem:[%s6 + $0x18] sm:$0xff]
        %vm1004 = vcmask 261120
        %v1006 = vsel %vm1004, %v908, 0
        %v1009 = vsel %vm1004, %v911, 0
        %v1012 = vsel %vm1004, %v937, 0
        %v1015 = vsel %vm1004, %v940, 0
        %v1018 = vsel %vm1004, %v966, 0
        %v1021 = vsel %vm1004, %v969, 0
        %v1024 = vsel %vm1004, %v995, 0
        %v1027 = vsel %vm1004, %v998, 0
        %1029 = vmatpush.msra.mxu0 0.0
        %1030 = vmatpush.msra.mxu0 0.0
        %1031 = vmatpush.msra.mxu0 0.0
        %1032 = vmatpush.msra.mxu0 0.0
        %1033 = vmatpush.msra.mxu0 0.0
        %1034 = vmatpush.msra.mxu0 0.0
        %1035 = vmatpush.msra.mxu0 0.0
        %1036 = vmatpush.msra.mxu0 0.0
        %1037 = vmatpush.msra.mxu0 0.0
        %1038 = vmatpush.msra.mxu0 0.0
        %1039 = vmatpush.msra.mxu0 0.0
        %1040 = vmatpush.msra.mxu0 0.0
        %1041 = vmatpush.msra.mxu0 %v1003
        %1042 = vmatpush.msra.mxu0 %v1002
        %1043 = vmatpush.msra.mxu0 %v1001
        %1044 = vmatpush.msra.mxu0 %v1000
        %1045 = vmatmul.f32.gmra.mxu0 %v1006
        %v1046 = vpop.f32.mrf.mxu0
        %v1047 = vadd.f32 0.0, %v1046
        %1048 = vmatmul.f32.gmra.mxu0 %v1009
        %v1049 = vpop.f32.mrf.mxu0
        %v1050 = vadd.f32 0.0, %v1049
        %1051 = vmatmul.f32.gmra.mxu0 %v1012
        %v1052 = vpop.f32.mrf.mxu0
        %v1053 = vadd.f32 0.0, %v1052
        %1054 = vmatmul.f32.gmra.mxu0 %v1015
        %v1055 = vpop.f32.mrf.mxu0
        %v1056 = vadd.f32 0.0, %v1055
        %1057 = vmatmul.f32.gmra.mxu0 %v1018
        %v1058 = vpop.f32.mrf.mxu0
        %v1059 = vadd.f32 0.0, %v1058
        %1060 = vmatmul.f32.gmra.mxu0 %v1021
        %v1061 = vpop.f32.mrf.mxu0
        %v1062 = vadd.f32 0.0, %v1061
        %1063 = vmatmul.f32.gmra.mxu0 %v1024
        %v1064 = vpop.f32.mrf.mxu0
        %v1065 = vadd.f32 0.0, %v1064
        %1066 = vmatmul.f32.gmra.mxu0 %v1027
        %v1067 = vpop.f32.mrf.mxu0
        %v1068 = vadd.f32 0.0, %v1067
        %1069 = vdwg.mxu0
        %v1070 = vmax.f32 %v1047, 0.0
        %v1071 = vmax.f32 %v1050, 0.0
        %v1072 = vmax.f32 %v1053, 0.0
        %v1073 = vmax.f32 %v1056, 0.0
        %v1074 = vmax.f32 %v1059, 0.0
        %v1075 = vmax.f32 %v1062, 0.0
        %v1076 = vmax.f32 %v1065, 0.0
        %v1077 = vmax.f32 %v1068, 0.0
        %v1078 = vld [vmem:[%s7] sm:$0xff]
        %v1079 = vld [vmem:[%s7 + $0x8] sm:$0xff]
        %v1080 = vld [vmem:[%s7 + $0x10] sm:$0xff]
        %v1081 = vld [vmem:[%s7 + $0x18] sm:$0xff]
        %v1082 = vld [vmem:[%s8] sm:$0x1]
        %v1084 = vperm.slane %v1082, 0
        %v1087 = vsel %vm1004, %v1070, 0
        %v1090 = vsel %vm1004, %v1071, 0
        %v1093 = vsel %vm1004, %v1072, 0
        %v1096 = vsel %vm1004, %v1073, 0
        %v1099 = vsel %vm1004, %v1074, 0
        %v1102 = vsel %vm1004, %v1075, 0
        %v1105 = vsel %vm1004, %v1076, 0
        %v1108 = vsel %vm1004, %v1077, 0
        %1110 = vmatpush.msra.mxu0 0.0
        %1111 = vmatpush.msra.mxu0 0.0
        %1112 = vmatpush.msra.mxu0 0.0
        %1113 = vmatpush.msra.mxu0 0.0
        %1114 = vmatpush.msra.mxu0 0.0
        %1115 = vmatpush.msra.mxu0 0.0
        %1116 = vmatpush.msra.mxu0 0.0
        %1117 = vmatpush.msra.mxu0 0.0
        %1118 = vmatpush.msra.mxu0 0.0
        %1119 = vmatpush.msra.mxu0 0.0
        %1120 = vmatpush.msra.mxu0 0.0
        %1121 = vmatpush.msra.mxu0 0.0
        %1122 = vmatpush.msra.mxu0 %v1081
        %1123 = vmatpush.msra.mxu0 %v1080
        %1124 = vmatpush.msra.mxu0 %v1079
        %1125 = vmatpush.msra.mxu0 %v1078
        %1126 = vmatmul.f32.gmra.mxu0 %v1087
        %v1127 = vpop.f32.mrf.mxu0
        %v1128 = vadd.f32 %v1084, %v1127
        %1129 = vmatmul.f32.gmra.mxu0 %v1090
        %v1130 = vpop.f32.mrf.mxu0
        %v1131 = vadd.f32 %v1084, %v1130
        %1132 = vmatmul.f32.gmra.mxu0 %v1093
        %v1133 = vpop.f32.mrf.mxu0
        %v1134 = vadd.f32 %v1084, %v1133
        %1135 = vmatmul.f32.gmra.mxu0 %v1096
        %v1136 = vpop.f32.mrf.mxu0
        %v1137 = vadd.f32 %v1084, %v1136
        %1138 = vmatmul.f32.gmra.mxu0 %v1099
        %v1139 = vpop.f32.mrf.mxu0
        %v1140 = vadd.f32 %v1084, %v1139
        %1141 = vmatmul.f32.gmra.mxu0 %v1102
        %v1142 = vpop.f32.mrf.mxu0
        %v1143 = vadd.f32 %v1084, %v1142
        %1144 = vmatmul.f32.gmra.mxu0 %v1105
        %v1145 = vpop.f32.mrf.mxu0
        %v1146 = vadd.f32 %v1084, %v1145
        %1147 = vmatmul.f32.gmra.mxu0 %v1108
        %v1148 = vpop.f32.mrf.mxu0
        %v1149 = vadd.f32 %v1084, %v1148
        %1150 = vdwg.mxu0
        %1151 = vst.msk [vmem:[%s392] sm:$0xff] %vm883, %v1128
        %1152 = vst.msk [vmem:[%s392 + $0x8] sm:$0xff] %vm883, %v1131
        %1153 = vst.msk [vmem:[%s392 + $0x10] sm:$0xff] %vm883, %v1134
        %1154 = vst.msk [vmem:[%s392 + $0x18] sm:$0xff] %vm883, %v1137
        %1155 = vst.msk [vmem:[%s392 + $0x20] sm:$0xff] %vm883, %v1140
        %1156 = vst.msk [vmem:[%s392 + $0x28] sm:$0xff] %vm883, %v1143
        %1157 = vst.msk [vmem:[%s392 + $0x30] sm:$0xff] %vm883, %v1146
        %1158 = vst.msk [vmem:[%s392 + $0x38] sm:$0xff] %vm883, %v1149
        %s1159 = sand.u32 %s237, 1
        %s1160 = scalar_lea.sflag [#allocation3], %s1159
        %s1161 = sand.u32 %s237, 1
        %s1162 = smul.addr %s1161, 64
        %s1163 = scalar_lea.vmem [#allocation2], %s1162
        %s1164 = smul.u32 4, %s25
        %p1165 = scmp.lt.s32.totalorder %s1164, 7
        %s1166 = scalar_select %p1165, %s1164, 7
        %s1167 = smul.addr %s1166, 2
        %s1168 = smul.addr %s1167, 8
        %s1169 = scalar_lea.vmem %s10, %s1168
        // Predicated region
        $region57: #{tpu_custom_call.1} parent=55 // pred_check
          %p1170 = pneg %p247
        $region58: #{tpu_custom_call.1} parent=55 // pred_check_branch
          %1172 = sbr.rel (%p1170) target = $region60
        $region59: #{tpu_custom_call.1} parent=55 // pred_region
          %s1173 = smul.u32 4, %s25
          %1175 = vsyncadd %s1160, 0
          %s1176 = smul.addr %s1173, 2
          %s1177 = smul.addr %s1176, 8
          %s1178 = scalar_lea.hbm %s9, %s1177
          %s1179 = sshll.u32 %s1163, 4
          %s1180 = int_to_ptr.vmem [resolvable:$true] %s1179
          %s1181 = sshll.u32 %s1178, 4
          %s1182 = int_to_ptr.hbm [resolvable:$true] %s1181
          %1187 = dma.vmem_to_hbm [thread:$0]  %s1180, 1024, %s1182, %s1160, 128, 128, 8
        $region60: #{tpu_custom_call.1} parent=55 // pred_fallthru
          _
        // Predicated region
        $region61: #{tpu_custom_call.1} parent=55 // pred_check
          %p1188 = pneg %p273
        $region62: #{tpu_custom_call.1} parent=55 // pred_check_branch
          %1190 = sbr.rel (%p1188) target = $region64
        $region63: #{tpu_custom_call.1} parent=55 // pred_region
          %s1191 = smul.u32 4, %s25
        $region64: #{tpu_custom_call.1} parent=55 // pred_fallthru
          _
      $region56: #{tpu_custom_call.1} parent=5 // pred_fallthru
        _
      %p1192 = scmp.le.s32.totalorder 2, %s20
      // Predicated region
      $region65: #{tpu_custom_call.1} parent=5 // pred_check
        %p1193 = pneg %p1192
      $region66: #{tpu_custom_call.1} parent=5 // pred_check_branch
        %1195 = sbr.rel (%p1193) target = $region68
      $region67: #{tpu_custom_call.1} parent=5 // pred_region
        %s1196 = ssub.s32 %s20, 2
        // Predicated region
        $region69: #{tpu_custom_call.1} parent=67 // pred_check
          %p1197 = pneg %p253
        $region70: #{tpu_custom_call.1} parent=67 // pred_check_branch
          %1199 = sbr.rel (%p1197) target = $region72
        $region71: #{tpu_custom_call.1} parent=67 // pred_region
          %s1200 = sand.u32 %s238, 1
          %s1201 = scalar_lea.sflag [#allocation3], %s1200
          %s1202 = sand.u32 %s238, 1
          %s1203 = smul.addr %s1202, 64
          %s1204 = scalar_lea.vmem [#allocation2], %s1203
          %1206 = dma.done %s1201, 1024
        $region72: #{tpu_custom_call.1} parent=67 // pred_fallthru
          _
        // Predicated region
        $region73: #{tpu_custom_call.1} parent=67 // pred_check
          %p1207 = pneg %p279
        $region74: #{tpu_custom_call.1} parent=67 // pred_check_branch
          %1209 = sbr.rel (%p1207) target = $region76
        $region75: #{tpu_custom_call.1} parent=67 // pred_region
          %s1210 = smul.u32 4, %s26
          %p1211 = scmp.lt.s32.totalorder %s1210, 7
          %s1212 = scalar_select %p1211, %s1210, 7
          %s1213 = smul.addr %s1212, 2
          %s1214 = smul.addr %s1213, 8
          %s1215 = scalar_lea.vmem %s10, %s1214
        $region76: #{tpu_custom_call.1} parent=67 // pred_fallthru
          _
      $region68: #{tpu_custom_call.1} parent=5 // pred_fallthru
        _
    $region6: #{tpu_custom_call.1} parent=1 // loop_footer
      %s24 = sadd.s32 1, %s20
    $region7: #{tpu_custom_call.1} parent=1 // loop_footer_branch
      %19 = sbr.rel target = $region3
    $region8: #{tpu_custom_call.1} parent=1 // loop_exit
      _
    %1216 = vsyncpa [#allocation3], 1
    %s1217 = scalar_lea.sflag [#allocation3], 1
    %1218 = vsyncpa %s1217, 1

</llo_original>
